<compile_context>
chip_gen: v7x
topology: tpu7x:2x2x1
jax: 0.10.0
libtpu: 0.0.40
codegen_flags: <defaults>
</compile_context>

<pallas_src>
import math

import jax
import jax.numpy as jnp
from jax.experimental import pallas as pl
from jax.experimental.pallas import tpu as pltpu


def _block_kernel(x_ref, dww_ref, dwb_ref, lnw_ref, lnb_ref,
                  w1_ref, b1_ref, gamma_ref, beta_ref, w2_ref, b2_ref,
                  o_ref):
    # x_ref  : (B_tile, L, C)  channels-last input tile (also the residual source)
    # dww_ref: (7, C)  depthwise conv taps     dwb_ref: (1, C)
    # lnw_ref: (1, C)  layernorm scale         lnb_ref: (1, C)
    # w1_ref : (C, 4C) pwconv1 (pre-transposed) b1_ref: (1, 4C)
    # gamma  : (1, 4C) GRN gamma               beta  : (1, 4C)
    # w2_ref : (4C, C) pwconv2 (pre-transposed) b2_ref: (1, C)
    B, L, C = x_ref.shape
    BL = B * L

    x3 = x_ref[...].astype(jnp.float32)          # (B, L, C)
    x2 = x3.reshape(BL, C)                       # rows are batch-major, length-minor

    # --- depthwise conv1d, kernel_size=7, padding=3, groups=C ---
    # y[l] = sum_d w[d+3] * x[l+d], zero outside [0, L).  Shifts are done with
    # pltpu.roll (XLU slot) over the flattened row axis; rows whose source index
    # l+d falls outside the sample are masked, which also neutralizes any
    # cross-sample / wrap-around rows introduced by the roll.
    dww = dww_ref[...].astype(jnp.float32)       # (7, C)
    l_idx = jax.lax.broadcasted_iota(jnp.int32, (BL, 1), 0) % L
    acc = x2 * dww[3:4, :]                       # center tap (d = 0), always valid
    for d in (-3, -2, -1, 1, 2, 3):              # static unroll over the other 6 taps
        shifted = pltpu.roll(x2, (-d) % BL, 0)   # row r now holds x[row r + d]
        valid = jnp.logical_and(l_idx + d >= 0, l_idx + d < L)
        acc = acc + jnp.where(valid, shifted, 0.0) * dww[d + 3:d + 4, :]
    y = acc + dwb_ref[...].astype(jnp.float32)

    # --- LayerNorm over channels (eps=1e-6, affine), matches F.layer_norm ---
    mean = jnp.mean(y, axis=-1, keepdims=True)
    var = jnp.mean((y - mean) ** 2, axis=-1, keepdims=True)
    yn = (y - mean) * jax.lax.rsqrt(var + 1e-6)
    yn = yn * lnw_ref[...].astype(jnp.float32) + lnb_ref[...].astype(jnp.float32)

    # --- pwconv1 (Linear C -> 4C) + exact erf GELU (keeps nn.GELU numerics) ---
    h = jnp.dot(yn, w1_ref[...].astype(jnp.float32),
                preferred_element_type=jnp.float32) + b1_ref[...].astype(jnp.float32)
    h = 0.5 * h * (1.0 + jax.lax.erf(h * 0.7071067811865476))

    # --- GRN: per-sample L2 norm over the length axis ---
    H = h.shape[-1]
    h3 = h.reshape(B, L, H)
    gx = jnp.sqrt(jnp.sum(h3 * h3, axis=1, keepdims=True))          # (B, 1, H)
    nx = gx / (jnp.mean(gx, axis=-1, keepdims=True) + 1e-6)         # (B, 1, H)
    h3 = gamma_ref[...].astype(jnp.float32) * (h3 * nx) \
        + beta_ref[...].astype(jnp.float32) + h3
    h = h3.reshape(BL, H)

    # --- pwconv2 (Linear 4C -> C) + residual ---
    out = jnp.dot(h, w2_ref[...].astype(jnp.float32),
                  preferred_element_type=jnp.float32) + b2_ref[...].astype(jnp.float32)
    o_ref[...] = (x3 + out.reshape(B, L, C)).astype(o_ref.dtype)


def _pick_batch_tile(N, L, target_rows=512):
    """Largest divisor of N such that B_tile*L is around target_rows."""
    bt = max(1, min(N, max(1, target_rows // max(L, 1))))
    while N % bt:
        bt -= 1
    return bt


def convnext_block(x_ncl, params, *, target_rows=512):
    """x_ncl: (N, C, L) float32. Returns (N, C, L)."""
    dw_w, dw_b, ln_w, ln_b, w1, b1, gamma, beta, w2, b2 = params
    N, C, L = x_ncl.shape
    H = 4 * C
    B_tile = _pick_batch_tile(N, L, target_rows)
    grid = (N // B_tile,)

    # TODO(synk): fold the NCL<->NLC transposes into the kernel (in-kernel transpose /
    # einshape) to remove these two XLA passes; kept in the wrapper for robust lowering
    # at small, non-128-aligned C.
    x_nlc = jnp.transpose(x_ncl, (0, 2, 1))                 # (N, L, C)

    out_nlc = pl.pallas_call(
        _block_kernel,
        out_shape=jax.ShapeDtypeStruct((N, L, C), x_ncl.dtype),
        grid_spec=pltpu.PrefetchScalarGridSpec(
            num_scalar_prefetch=0,
            grid=grid,
            in_specs=[
                pl.BlockSpec((B_tile, L, C), lambda n: (n, 0, 0)),  # x (single stream)
                pl.BlockSpec((7, C), lambda n: (0, 0)),              # dwconv weight
                pl.BlockSpec((1, C), lambda n: (0, 0)),              # dwconv bias
                pl.BlockSpec((1, C), lambda n: (0, 0)),              # ln weight
                pl.BlockSpec((1, C), lambda n: (0, 0)),              # ln bias
                pl.BlockSpec((C, H), lambda n: (0, 0)),              # pwconv1 weight^T
                pl.BlockSpec((1, H), lambda n: (0, 0)),              # pwconv1 bias
                pl.BlockSpec((1, H), lambda n: (0, 0)),              # GRN gamma
                pl.BlockSpec((1, H), lambda n: (0, 0)),              # GRN beta
                pl.BlockSpec((H, C), lambda n: (0, 0)),              # pwconv2 weight^T
                pl.BlockSpec((1, C), lambda n: (0, 0)),              # pwconv2 bias
            ],
            out_specs=pl.BlockSpec((B_tile, L, C), lambda n: (n, 0, 0)),
        ),
        compiler_params=pltpu.CompilerParams(
            dimension_semantics=("parallel",),          # independent batch tiles
            vmem_limit_bytes=48 * 1024 * 1024,          # > 16/32 MiB defaults, < 64 MiB (v7x)
        ),
    )(x_nlc, dw_w, dw_b, ln_w, ln_b, w1, b1, gamma, beta, w2, b2)

    return jnp.transpose(out_nlc, (0, 2, 1))                # back to (N, C, L)


def reference_block(x_ncl, params):
    """Pure-JAX reference of the PyTorch forward (for validation)."""
    dw_w, dw_b, ln_w, ln_b, w1, b1, gamma, beta, w2, b2 = params
    N, C, L = x_ncl.shape
    x_nlc = jnp.transpose(x_ncl, (0, 2, 1))
    xp = jnp.pad(x_nlc, ((0, 0), (3, 3), (0, 0)))
    y = sum(xp[:, k:k + L, :] * dw_w[k][None, None, :] for k in range(7)) + dw_b
    mean = jnp.mean(y, axis=-1, keepdims=True)
    var = jnp.mean((y - mean) ** 2, axis=-1, keepdims=True)
    yn = (y - mean) / jnp.sqrt(var + 1e-6) * ln_w + ln_b
    h = yn @ w1 + b1
    h = 0.5 * h * (1.0 + jax.lax.erf(h / jnp.sqrt(2.0)))
    gx = jnp.sqrt(jnp.sum(h * h, axis=1, keepdims=True))
    nx = gx / (jnp.mean(gx, axis=-1, keepdims=True) + 1e-6)
    h = gamma * (h * nx) + beta + h
    out = h @ w2 + b2
    return x_ncl + jnp.transpose(out, (0, 2, 1))


if __name__ == "__main__":
    # Small shapes consistent with the module: batch=2, dim(channels)=8, length=16.
    N, C, L = 2, 8, 16
    H = 4 * C

    key = jax.random.PRNGKey(0)
    keys = jax.random.split(key, 11)
    x = jax.random.normal(keys[0], (N, C, L), jnp.float32)

    # Deterministic parameter init (shapes from the module's __init__).
    dw_w = 0.2 * jax.random.normal(keys[1], (7, C), jnp.float32)     # depthwise taps
    dw_b = 0.1 * jax.random.normal(keys[2], (1, C), jnp.float32)
    ln_w = 1.0 + 0.1 * jax.random.normal(keys[3], (1, C), jnp.float32)
    ln_b = 0.1 * jax.random.normal(keys[4], (1, C), jnp.float32)
    w1 = (1.0 / math.sqrt(C)) * jax.random.normal(keys[5], (C, H), jnp.float32)
    b1 = 0.1 * jax.random.normal(keys[6], (1, H), jnp.float32)
    # GRN gamma/beta are zeros in the module's __init__; use small non-zero values
    # so the GRN path is actually exercised.
    gamma = 0.1 * jax.random.normal(keys[7], (1, H), jnp.float32)
    beta = 0.1 * jax.random.normal(keys[8], (1, H), jnp.float32)
    w2 = (1.0 / math.sqrt(H)) * jax.random.normal(keys[9], (H, C), jnp.float32)
    b2 = 0.1 * jax.random.normal(keys[10], (1, C), jnp.float32)

    params = (dw_w, dw_b, ln_w, ln_b, w1, b1, gamma, beta, w2, b2)

    out = jax.block_until_ready(convnext_block(x, params))
    ref = jax.block_until_ready(reference_block(x, params))

    assert out.shape == (N, C, L), out.shape
    assert jnp.allclose(out, ref, rtol=1e-4, atol=1e-4), float(jnp.max(jnp.abs(out - ref)))
    print("KERNEL_OK")
</pallas_src>

<mosaic_0001>
module attributes {stable_mosaic.version = 11 : i64} {
  func.func @_block_kernel(%arg0: i32, %arg1: memref<2x16x8xf32, #tpu.memory_space<vmem>>, %arg2: memref<7x8xf32, #tpu.memory_space<vmem>>, %arg3: memref<1x8xf32, #tpu.memory_space<vmem>>, %arg4: memref<1x8xf32, #tpu.memory_space<vmem>>, %arg5: memref<1x8xf32, #tpu.memory_space<vmem>>, %arg6: memref<8x32xf32, #tpu.memory_space<vmem>>, %arg7: memref<1x32xf32, #tpu.memory_space<vmem>>, %arg8: memref<1x32xf32, #tpu.memory_space<vmem>>, %arg9: memref<1x32xf32, #tpu.memory_space<vmem>>, %arg10: memref<32x8xf32, #tpu.memory_space<vmem>>, %arg11: memref<1x8xf32, #tpu.memory_space<vmem>>, %arg12: memref<2x16x8xf32, #tpu.memory_space<vmem>>) attributes {dimension_semantics = [#tpu.dimension_semantics<parallel>], iteration_bounds = array<i64: 1>, scalar_prefetch = 0 : i64, scratch_operands = 0 : i64, tpu.core_type = #tpu.core_type<tc>, window_params = [{transform_indices = @transform_0, window_bounds = array<i64: 2, 16, 8>}, {pipeline_mode = #tpu.pipeline_mode<synchronous>, transform_indices = @transform_1, window_bounds = array<i64: 7, 8>}, {pipeline_mode = #tpu.pipeline_mode<synchronous>, transform_indices = @transform_2, window_bounds = array<i64: 1, 8>}, {pipeline_mode = #tpu.pipeline_mode<synchronous>, transform_indices = @transform_3, window_bounds = array<i64: 1, 8>}, {pipeline_mode = #tpu.pipeline_mode<synchronous>, transform_indices = @transform_4, window_bounds = array<i64: 1, 8>}, {pipeline_mode = #tpu.pipeline_mode<synchronous>, transform_indices = @transform_5, window_bounds = array<i64: 8, 32>}, {pipeline_mode = #tpu.pipeline_mode<synchronous>, transform_indices = @transform_6, window_bounds = array<i64: 1, 32>}, {pipeline_mode = #tpu.pipeline_mode<synchronous>, transform_indices = @transform_7, window_bounds = array<i64: 1, 32>}, {pipeline_mode = #tpu.pipeline_mode<synchronous>, transform_indices = @transform_8, window_bounds = array<i64: 1, 32>}, {pipeline_mode = #tpu.pipeline_mode<synchronous>, transform_indices = @transform_9, window_bounds = array<i64: 32, 8>}, {pipeline_mode = #tpu.pipeline_mode<synchronous>, transform_indices = @transform_10, window_bounds = array<i64: 1, 8>}, {transform_indices = @transform_11, window_bounds = array<i64: 2, 16, 8>}]} {
    %c0 = arith.constant 0 : index
    %c0_0 = arith.constant 0 : index
    %c0_1 = arith.constant 0 : index
    %0 = vector.load %arg1[%c0, %c0_0, %c0_1] : memref<2x16x8xf32, #tpu.memory_space<vmem>>, vector<2x16x8xf32>
    %1 = vector.shape_cast %0 : vector<2x16x8xf32> to vector<32x8xf32>
    %c0_2 = arith.constant 0 : index
    %c0_3 = arith.constant 0 : index
    %2 = vector.load %arg2[%c0_2, %c0_3] : memref<7x8xf32, #tpu.memory_space<vmem>>, vector<7x8xf32>
    %3 = tpu.iota {dimensions = array<i32: 0>} : vector<32x1xi32>
    %c16_i32 = arith.constant 16 : i32
    %c0_i32 = arith.constant 0 : i32
    %4 = arith.cmpi eq, %c16_i32, %c0_i32 : i32
    %c1_i32 = arith.constant 1 : i32
    %5 = arith.select %4, %c1_i32, %c16_i32 : i32
    %6 = vector.broadcast %5 : i32 to vector<32x1xi32>
    %7 = arith.remsi %3, %6 : vector<32x1xi32>
    %c0_i32_4 = arith.constant 0 : i32
    %8 = vector.broadcast %c0_i32_4 : i32 to vector<32x1xi32>
    %9 = arith.cmpi ne, %7, %8 : vector<32x1xi32>
    %c0_i32_5 = arith.constant 0 : i32
    %10 = vector.broadcast %c0_i32_5 : i32 to vector<32x1xi32>
    %11 = arith.cmpi slt, %7, %10 : vector<32x1xi32>
    %c0_i32_6 = arith.constant 0 : i32
    %12 = arith.cmpi slt, %5, %c0_i32_6 : i32
    %13 = vector.broadcast %12 : i1 to vector<32x1xi1>
    %14 = vector.broadcast %13 : vector<32x1xi1> to vector<32x1xi1>
    %15 = arith.xori %11, %14 : vector<32x1xi1>
    %16 = arith.andi %15, %9 : vector<32x1xi1>
    %17 = vector.broadcast %5 : i32 to vector<32x1xi32>
    %18 = arith.addi %7, %17 : vector<32x1xi32>
    %19 = arith.select %16, %18, %7 : vector<32x1xi1>, vector<32x1xi32>
    %20 = vector.extract_strided_slice %2 {offsets = [3, 0], sizes = [1, 8], strides = [1, 1]} : vector<7x8xf32> to vector<1x8xf32>
    %21 = vector.broadcast %20 : vector<1x8xf32> to vector<32x8xf32>
    %22 = arith.mulf %1, %21 : vector<32x8xf32>
    %c3_i32 = arith.constant 3 : i32
    %23 = tpu.dynamic_rotate %1 by %c3_i32 dim 0 : vector<32x8xf32>, i32 -> vector<32x8xf32>
    %c-3_i32 = arith.constant -3 : i32
    %24 = vector.broadcast %c-3_i32 : i32 to vector<32x1xi32>
    %25 = arith.addi %19, %24 : vector<32x1xi32>
    %c0_i32_7 = arith.constant 0 : i32
    %26 = vector.broadcast %c0_i32_7 : i32 to vector<32x1xi32>
    %27 = arith.cmpi sge, %25, %26 : vector<32x1xi32>
    %c-3_i32_8 = arith.constant -3 : i32
    %28 = vector.broadcast %c-3_i32_8 : i32 to vector<32x1xi32>
    %29 = arith.addi %19, %28 : vector<32x1xi32>
    %c16_i32_9 = arith.constant 16 : i32
    %30 = vector.broadcast %c16_i32_9 : i32 to vector<32x1xi32>
    %31 = arith.cmpi slt, %29, %30 : vector<32x1xi32>
    %32 = arith.andi %27, %31 : vector<32x1xi1>
    %cst = arith.constant 0.000000e+00 : f32
    %33 = vector.shape_cast %32 : vector<32x1xi1> to vector<32x1xi1>
    %34 = vector.broadcast %33 : vector<32x1xi1> to vector<32x8xi1>
    %35 = vector.broadcast %cst : f32 to vector<32x8xf32>
    %36 = arith.select %34, %23, %35 : vector<32x8xi1>, vector<32x8xf32>
    %37 = vector.extract_strided_slice %2 {offsets = [0, 0], sizes = [1, 8], strides = [1, 1]} : vector<7x8xf32> to vector<1x8xf32>
    %38 = vector.broadcast %37 : vector<1x8xf32> to vector<32x8xf32>
    %39 = arith.mulf %36, %38 : vector<32x8xf32>
    %40 = arith.addf %22, %39 : vector<32x8xf32>
    %c2_i32 = arith.constant 2 : i32
    %41 = tpu.dynamic_rotate %1 by %c2_i32 dim 0 : vector<32x8xf32>, i32 -> vector<32x8xf32>
    %c-2_i32 = arith.constant -2 : i32
    %42 = vector.broadcast %c-2_i32 : i32 to vector<32x1xi32>
    %43 = arith.addi %19, %42 : vector<32x1xi32>
    %c0_i32_10 = arith.constant 0 : i32
    %44 = vector.broadcast %c0_i32_10 : i32 to vector<32x1xi32>
    %45 = arith.cmpi sge, %43, %44 : vector<32x1xi32>
    %c-2_i32_11 = arith.constant -2 : i32
    %46 = vector.broadcast %c-2_i32_11 : i32 to vector<32x1xi32>
    %47 = arith.addi %19, %46 : vector<32x1xi32>
    %c16_i32_12 = arith.constant 16 : i32
    %48 = vector.broadcast %c16_i32_12 : i32 to vector<32x1xi32>
    %49 = arith.cmpi slt, %47, %48 : vector<32x1xi32>
    %50 = arith.andi %45, %49 : vector<32x1xi1>
    %cst_13 = arith.constant 0.000000e+00 : f32
    %51 = vector.shape_cast %50 : vector<32x1xi1> to vector<32x1xi1>
    %52 = vector.broadcast %51 : vector<32x1xi1> to vector<32x8xi1>
    %53 = vector.broadcast %cst_13 : f32 to vector<32x8xf32>
    %54 = arith.select %52, %41, %53 : vector<32x8xi1>, vector<32x8xf32>
    %55 = vector.extract_strided_slice %2 {offsets = [1, 0], sizes = [1, 8], strides = [1, 1]} : vector<7x8xf32> to vector<1x8xf32>
    %56 = vector.broadcast %55 : vector<1x8xf32> to vector<32x8xf32>
    %57 = arith.mulf %54, %56 : vector<32x8xf32>
    %58 = arith.addf %40, %57 : vector<32x8xf32>
    %c1_i32_14 = arith.constant 1 : i32
    %59 = tpu.dynamic_rotate %1 by %c1_i32_14 dim 0 : vector<32x8xf32>, i32 -> vector<32x8xf32>
    %c-1_i32 = arith.constant -1 : i32
    %60 = vector.broadcast %c-1_i32 : i32 to vector<32x1xi32>
    %61 = arith.addi %19, %60 : vector<32x1xi32>
    %c0_i32_15 = arith.constant 0 : i32
    %62 = vector.broadcast %c0_i32_15 : i32 to vector<32x1xi32>
    %63 = arith.cmpi sge, %61, %62 : vector<32x1xi32>
    %c-1_i32_16 = arith.constant -1 : i32
    %64 = vector.broadcast %c-1_i32_16 : i32 to vector<32x1xi32>
    %65 = arith.addi %19, %64 : vector<32x1xi32>
    %c16_i32_17 = arith.constant 16 : i32
    %66 = vector.broadcast %c16_i32_17 : i32 to vector<32x1xi32>
    %67 = arith.cmpi slt, %65, %66 : vector<32x1xi32>
    %68 = arith.andi %63, %67 : vector<32x1xi1>
    %cst_18 = arith.constant 0.000000e+00 : f32
    %69 = vector.shape_cast %68 : vector<32x1xi1> to vector<32x1xi1>
    %70 = vector.broadcast %69 : vector<32x1xi1> to vector<32x8xi1>
    %71 = vector.broadcast %cst_18 : f32 to vector<32x8xf32>
    %72 = arith.select %70, %59, %71 : vector<32x8xi1>, vector<32x8xf32>
    %73 = vector.extract_strided_slice %2 {offsets = [2, 0], sizes = [1, 8], strides = [1, 1]} : vector<7x8xf32> to vector<1x8xf32>
    %74 = vector.broadcast %73 : vector<1x8xf32> to vector<32x8xf32>
    %75 = arith.mulf %72, %74 : vector<32x8xf32>
    %76 = arith.addf %58, %75 : vector<32x8xf32>
    %c31_i32 = arith.constant 31 : i32
    %77 = tpu.dynamic_rotate %1 by %c31_i32 dim 0 : vector<32x8xf32>, i32 -> vector<32x8xf32>
    %c1_i32_19 = arith.constant 1 : i32
    %78 = vector.broadcast %c1_i32_19 : i32 to vector<32x1xi32>
    %79 = arith.addi %19, %78 : vector<32x1xi32>
    %c0_i32_20 = arith.constant 0 : i32
    %80 = vector.broadcast %c0_i32_20 : i32 to vector<32x1xi32>
    %81 = arith.cmpi sge, %79, %80 : vector<32x1xi32>
    %c1_i32_21 = arith.constant 1 : i32
    %82 = vector.broadcast %c1_i32_21 : i32 to vector<32x1xi32>
    %83 = arith.addi %19, %82 : vector<32x1xi32>
    %c16_i32_22 = arith.constant 16 : i32
    %84 = vector.broadcast %c16_i32_22 : i32 to vector<32x1xi32>
    %85 = arith.cmpi slt, %83, %84 : vector<32x1xi32>
    %86 = arith.andi %81, %85 : vector<32x1xi1>
    %cst_23 = arith.constant 0.000000e+00 : f32
    %87 = vector.shape_cast %86 : vector<32x1xi1> to vector<32x1xi1>
    %88 = vector.broadcast %87 : vector<32x1xi1> to vector<32x8xi1>
    %89 = vector.broadcast %cst_23 : f32 to vector<32x8xf32>
    %90 = arith.select %88, %77, %89 : vector<32x8xi1>, vector<32x8xf32>
    %91 = vector.extract_strided_slice %2 {offsets = [4, 0], sizes = [1, 8], strides = [1, 1]} : vector<7x8xf32> to vector<1x8xf32>
    %92 = vector.broadcast %91 : vector<1x8xf32> to vector<32x8xf32>
    %93 = arith.mulf %90, %92 : vector<32x8xf32>
    %94 = arith.addf %76, %93 : vector<32x8xf32>
    %c30_i32 = arith.constant 30 : i32
    %95 = tpu.dynamic_rotate %1 by %c30_i32 dim 0 : vector<32x8xf32>, i32 -> vector<32x8xf32>
    %c2_i32_24 = arith.constant 2 : i32
    %96 = vector.broadcast %c2_i32_24 : i32 to vector<32x1xi32>
    %97 = arith.addi %19, %96 : vector<32x1xi32>
    %c0_i32_25 = arith.constant 0 : i32
    %98 = vector.broadcast %c0_i32_25 : i32 to vector<32x1xi32>
    %99 = arith.cmpi sge, %97, %98 : vector<32x1xi32>
    %c2_i32_26 = arith.constant 2 : i32
    %100 = vector.broadcast %c2_i32_26 : i32 to vector<32x1xi32>
    %101 = arith.addi %19, %100 : vector<32x1xi32>
    %c16_i32_27 = arith.constant 16 : i32
    %102 = vector.broadcast %c16_i32_27 : i32 to vector<32x1xi32>
    %103 = arith.cmpi slt, %101, %102 : vector<32x1xi32>
    %104 = arith.andi %99, %103 : vector<32x1xi1>
    %cst_28 = arith.constant 0.000000e+00 : f32
    %105 = vector.shape_cast %104 : vector<32x1xi1> to vector<32x1xi1>
    %106 = vector.broadcast %105 : vector<32x1xi1> to vector<32x8xi1>
    %107 = vector.broadcast %cst_28 : f32 to vector<32x8xf32>
    %108 = arith.select %106, %95, %107 : vector<32x8xi1>, vector<32x8xf32>
    %109 = vector.extract_strided_slice %2 {offsets = [5, 0], sizes = [1, 8], strides = [1, 1]} : vector<7x8xf32> to vector<1x8xf32>
    %110 = vector.broadcast %109 : vector<1x8xf32> to vector<32x8xf32>
    %111 = arith.mulf %108, %110 : vector<32x8xf32>
    %112 = arith.addf %94, %111 : vector<32x8xf32>
    %c29_i32 = arith.constant 29 : i32
    %113 = tpu.dynamic_rotate %1 by %c29_i32 dim 0 : vector<32x8xf32>, i32 -> vector<32x8xf32>
    %c3_i32_29 = arith.constant 3 : i32
    %114 = vector.broadcast %c3_i32_29 : i32 to vector<32x1xi32>
    %115 = arith.addi %19, %114 : vector<32x1xi32>
    %c0_i32_30 = arith.constant 0 : i32
    %116 = vector.broadcast %c0_i32_30 : i32 to vector<32x1xi32>
    %117 = arith.cmpi sge, %115, %116 : vector<32x1xi32>
    %c3_i32_31 = arith.constant 3 : i32
    %118 = vector.broadcast %c3_i32_31 : i32 to vector<32x1xi32>
    %119 = arith.addi %19, %118 : vector<32x1xi32>
    %c16_i32_32 = arith.constant 16 : i32
    %120 = vector.broadcast %c16_i32_32 : i32 to vector<32x1xi32>
    %121 = arith.cmpi slt, %119, %120 : vector<32x1xi32>
    %122 = arith.andi %117, %121 : vector<32x1xi1>
    %cst_33 = arith.constant 0.000000e+00 : f32
    %123 = vector.shape_cast %122 : vector<32x1xi1> to vector<32x1xi1>
    %124 = vector.broadcast %123 : vector<32x1xi1> to vector<32x8xi1>
    %125 = vector.broadcast %cst_33 : f32 to vector<32x8xf32>
    %126 = arith.select %124, %113, %125 : vector<32x8xi1>, vector<32x8xf32>
    %127 = vector.extract_strided_slice %2 {offsets = [6, 0], sizes = [1, 8], strides = [1, 1]} : vector<7x8xf32> to vector<1x8xf32>
    %128 = vector.broadcast %127 : vector<1x8xf32> to vector<32x8xf32>
    %129 = arith.mulf %126, %128 : vector<32x8xf32>
    %130 = arith.addf %112, %129 : vector<32x8xf32>
    %c0_34 = arith.constant 0 : index
    %c0_35 = arith.constant 0 : index
    %131 = vector.load %arg3[%c0_34, %c0_35] : memref<1x8xf32, #tpu.memory_space<vmem>>, vector<1x8xf32>
    %132 = vector.broadcast %131 : vector<1x8xf32> to vector<32x8xf32>
    %133 = arith.addf %130, %132 : vector<32x8xf32>
    %cst_36 = arith.constant dense<0.000000e+00> : vector<32xf32>
    %134 = vector.multi_reduction <add>, %133, %cst_36 [1] : vector<32x8xf32> to vector<32xf32>
    %135 = vector.shape_cast %134 : vector<32xf32> to vector<32x1xf32>
    %cst_37 = arith.constant 8.000000e+00 : f32
    %136 = vector.broadcast %cst_37 : f32 to vector<32x1xf32>
    %137 = arith.divf %135, %136 : vector<32x1xf32>
    %138 = vector.broadcast %137 : vector<32x1xf32> to vector<32x8xf32>
    %139 = arith.subf %133, %138 : vector<32x8xf32>
    %140 = arith.mulf %139, %139 : vector<32x8xf32>
    %cst_38 = arith.constant dense<0.000000e+00> : vector<32xf32>
    %141 = vector.multi_reduction <add>, %140, %cst_38 [1] : vector<32x8xf32> to vector<32xf32>
    %142 = vector.shape_cast %141 : vector<32xf32> to vector<32x1xf32>
    %cst_39 = arith.constant 8.000000e+00 : f32
    %143 = vector.broadcast %cst_39 : f32 to vector<32x1xf32>
    %144 = arith.divf %142, %143 : vector<32x1xf32>
    %145 = vector.broadcast %137 : vector<32x1xf32> to vector<32x8xf32>
    %146 = arith.subf %133, %145 : vector<32x8xf32>
    %cst_40 = arith.constant 9.99999997E-7 : f32
    %147 = vector.broadcast %cst_40 : f32 to vector<32x1xf32>
    %148 = arith.addf %144, %147 : vector<32x1xf32>
    %149 = math.rsqrt %148 : vector<32x1xf32>
    %150 = vector.broadcast %149 : vector<32x1xf32> to vector<32x8xf32>
    %151 = arith.mulf %146, %150 : vector<32x8xf32>
    %c0_41 = arith.constant 0 : index
    %c0_42 = arith.constant 0 : index
    %152 = vector.load %arg4[%c0_41, %c0_42] : memref<1x8xf32, #tpu.memory_space<vmem>>, vector<1x8xf32>
    %153 = vector.broadcast %152 : vector<1x8xf32> to vector<32x8xf32>
    %154 = arith.mulf %151, %153 : vector<32x8xf32>
    %c0_43 = arith.constant 0 : index
    %c0_44 = arith.constant 0 : index
    %155 = vector.load %arg5[%c0_43, %c0_44] : memref<1x8xf32, #tpu.memory_space<vmem>>, vector<1x8xf32>
    %156 = vector.broadcast %155 : vector<1x8xf32> to vector<32x8xf32>
    %157 = arith.addf %154, %156 : vector<32x8xf32>
    %c0_45 = arith.constant 0 : index
    %c0_46 = arith.constant 0 : index
    %158 = vector.load %arg6[%c0_45, %c0_46] : memref<8x32xf32, #tpu.memory_space<vmem>>, vector<8x32xf32>
    %cst_47 = arith.constant dense<0.000000e+00> : vector<32x32xf32>
    %159 = tpu.matmul %157, %158, %cst_47 {dimension_numbers = #tpu.dot_dimension_numbers<[1], [0], [0], [1], [0, 0, 1, 1], [], []>} : vector<32x8xf32>, vector<8x32xf32>, vector<32x32xf32> -> vector<32x32xf32>
    %c0_48 = arith.constant 0 : index
    %c0_49 = arith.constant 0 : index
    %160 = vector.load %arg7[%c0_48, %c0_49] : memref<1x32xf32, #tpu.memory_space<vmem>>, vector<1x32xf32>
    %161 = vector.broadcast %160 : vector<1x32xf32> to vector<32x32xf32>
    %162 = arith.addf %159, %161 : vector<32x32xf32>
    %cst_50 = arith.constant 5.000000e-01 : f32
    %163 = vector.broadcast %cst_50 : f32 to vector<32x32xf32>
    %164 = arith.mulf %163, %162 : vector<32x32xf32>
    %cst_51 = arith.constant 0.707106769 : f32
    %165 = vector.broadcast %cst_51 : f32 to vector<32x32xf32>
    %166 = arith.mulf %162, %165 : vector<32x32xf32>
    %167 = math.erf %166 : vector<32x32xf32>
    %cst_52 = arith.constant 1.000000e+00 : f32
    %168 = vector.broadcast %cst_52 : f32 to vector<32x32xf32>
    %169 = arith.addf %168, %167 : vector<32x32xf32>
    %170 = arith.mulf %164, %169 : vector<32x32xf32>
    %171 = vector.shape_cast %170 : vector<32x32xf32> to vector<2x16x32xf32>
    %172 = arith.mulf %171, %171 : vector<2x16x32xf32>
    %cst_53 = arith.constant dense<0.000000e+00> : vector<2x32xf32>
    %173 = vector.multi_reduction <add>, %172, %cst_53 [1] : vector<2x16x32xf32> to vector<2x32xf32>
    %174 = vector.shape_cast %173 : vector<2x32xf32> to vector<2x1x32xf32>
    %175 = math.sqrt %174 : vector<2x1x32xf32>
    %cst_54 = arith.constant dense<0.000000e+00> : vector<2x1xf32>
    %176 = vector.multi_reduction <add>, %175, %cst_54 [2] : vector<2x1x32xf32> to vector<2x1xf32>
    %177 = vector.shape_cast %176 : vector<2x1xf32> to vector<2x1x1xf32>
    %cst_55 = arith.constant 3.200000e+01 : f32
    %178 = vector.broadcast %cst_55 : f32 to vector<2x1x1xf32>
    %179 = arith.divf %177, %178 : vector<2x1x1xf32>
    %cst_56 = arith.constant 9.99999997E-7 : f32
    %180 = vector.broadcast %cst_56 : f32 to vector<2x1x1xf32>
    %181 = arith.addf %179, %180 : vector<2x1x1xf32>
    %182 = vector.broadcast %181 : vector<2x1x1xf32> to vector<2x1x32xf32>
    %183 = arith.divf %175, %182 : vector<2x1x32xf32>
    %c0_57 = arith.constant 0 : index
    %c0_58 = arith.constant 0 : index
    %184 = vector.load %arg8[%c0_57, %c0_58] : memref<1x32xf32, #tpu.memory_space<vmem>>, vector<1x32xf32>
    %185 = vector.broadcast %183 : vector<2x1x32xf32> to vector<2x16x32xf32>
    %186 = arith.mulf %171, %185 : vector<2x16x32xf32>
    %187 = vector.shape_cast %184 : vector<1x32xf32> to vector<1x1x32xf32>
    %188 = vector.broadcast %187 : vector<1x1x32xf32> to vector<2x16x32xf32>
    %189 = arith.mulf %188, %186 : vector<2x16x32xf32>
    %c0_59 = arith.constant 0 : index
    %c0_60 = arith.constant 0 : index
    %190 = vector.load %arg9[%c0_59, %c0_60] : memref<1x32xf32, #tpu.memory_space<vmem>>, vector<1x32xf32>
    %191 = vector.shape_cast %190 : vector<1x32xf32> to vector<1x1x32xf32>
    %192 = vector.broadcast %191 : vector<1x1x32xf32> to vector<2x16x32xf32>
    %193 = arith.addf %189, %192 : vector<2x16x32xf32>
    %194 = arith.addf %193, %171 : vector<2x16x32xf32>
    %195 = vector.shape_cast %194 : vector<2x16x32xf32> to vector<32x32xf32>
    %c0_61 = arith.constant 0 : index
    %c0_62 = arith.constant 0 : index
    %196 = vector.load %arg10[%c0_61, %c0_62] : memref<32x8xf32, #tpu.memory_space<vmem>>, vector<32x8xf32>
    %cst_63 = arith.constant dense<0.000000e+00> : vector<32x8xf32>
    %197 = tpu.matmul %195, %196, %cst_63 {dimension_numbers = #tpu.dot_dimension_numbers<[1], [0], [0], [1], [0, 0, 1, 1], [], []>} : vector<32x32xf32>, vector<32x8xf32>, vector<32x8xf32> -> vector<32x8xf32>
    %c0_64 = arith.constant 0 : index
    %c0_65 = arith.constant 0 : index
    %198 = vector.load %arg11[%c0_64, %c0_65] : memref<1x8xf32, #tpu.memory_space<vmem>>, vector<1x8xf32>
    %199 = vector.broadcast %198 : vector<1x8xf32> to vector<32x8xf32>
    %200 = arith.addf %197, %199 : vector<32x8xf32>
    %201 = vector.shape_cast %200 : vector<32x8xf32> to vector<2x16x8xf32>
    %202 = arith.addf %0, %201 : vector<2x16x8xf32>
    %c0_66 = arith.constant 0 : index
    %c0_67 = arith.constant 0 : index
    %c0_68 = arith.constant 0 : index
    %203 = vector.load %arg12[%c0_66, %c0_67, %c0_68] : memref<2x16x8xf32, #tpu.memory_space<vmem>>, vector<2x16x8xf32>
    tpu.vector_store %arg12[%c0_66, %c0_67, %c0_68], %202 {strides = array<i32>} : memref<2x16x8xf32, #tpu.memory_space<vmem>>, vector<2x16x8xf32>,
    return
  }
  func.func @transform_0(%arg0: i32) -> (i32, i32, i32) {
    %c0_i32 = arith.constant 0 : i32
    %c0_i32_0 = arith.constant 0 : i32
    %c0_i32_1 = arith.constant 0 : i32
    return %arg0, %c0_i32, %c0_i32_0 : i32, i32, i32
  }
  func.func @transform_1(%arg0: i32) -> (i32, i32) {
    %c0_i32 = arith.constant 0 : i32
    %c0_i32_0 = arith.constant 0 : i32
    %c0_i32_1 = arith.constant 0 : i32
    return %c0_i32, %c0_i32_0 : i32, i32
  }
  func.func @transform_2(%arg0: i32) -> (i32, i32) {
    %c0_i32 = arith.constant 0 : i32
    %c0_i32_0 = arith.constant 0 : i32
    %c0_i32_1 = arith.constant 0 : i32
    return %c0_i32, %c0_i32_0 : i32, i32
  }
  func.func @transform_3(%arg0: i32) -> (i32, i32) {
    %c0_i32 = arith.constant 0 : i32
    %c0_i32_0 = arith.constant 0 : i32
    %c0_i32_1 = arith.constant 0 : i32
    return %c0_i32, %c0_i32_0 : i32, i32
  }
  func.func @transform_4(%arg0: i32) -> (i32, i32) {
    %c0_i32 = arith.constant 0 : i32
    %c0_i32_0 = arith.constant 0 : i32
    %c0_i32_1 = arith.constant 0 : i32
    return %c0_i32, %c0_i32_0 : i32, i32
  }
  func.func @transform_5(%arg0: i32) -> (i32, i32) {
    %c0_i32 = arith.constant 0 : i32
    %c0_i32_0 = arith.constant 0 : i32
    %c0_i32_1 = arith.constant 0 : i32
    return %c0_i32, %c0_i32_0 : i32, i32
  }
  func.func @transform_6(%arg0: i32) -> (i32, i32) {
    %c0_i32 = arith.constant 0 : i32
    %c0_i32_0 = arith.constant 0 : i32
    %c0_i32_1 = arith.constant 0 : i32
    return %c0_i32, %c0_i32_0 : i32, i32
  }
  func.func @transform_7(%arg0: i32) -> (i32, i32) {
    %c0_i32 = arith.constant 0 : i32
    %c0_i32_0 = arith.constant 0 : i32
    %c0_i32_1 = arith.constant 0 : i32
    return %c0_i32, %c0_i32_0 : i32, i32
  }
  func.func @transform_8(%arg0: i32) -> (i32, i32) {
    %c0_i32 = arith.constant 0 : i32
    %c0_i32_0 = arith.constant 0 : i32
    %c0_i32_1 = arith.constant 0 : i32
    return %c0_i32, %c0_i32_0 : i32, i32
  }
  func.func @transform_9(%arg0: i32) -> (i32, i32) {
    %c0_i32 = arith.constant 0 : i32
    %c0_i32_0 = arith.constant 0 : i32
    %c0_i32_1 = arith.constant 0 : i32
    return %c0_i32, %c0_i32_0 : i32, i32
  }
  func.func @transform_10(%arg0: i32) -> (i32, i32) {
    %c0_i32 = arith.constant 0 : i32
    %c0_i32_0 = arith.constant 0 : i32
    %c0_i32_1 = arith.constant 0 : i32
    return %c0_i32, %c0_i32_0 : i32, i32
  }
  func.func @transform_11(%arg0: i32) -> (i32, i32, i32) {
    %c0_i32 = arith.constant 0 : i32
    %c0_i32_0 = arith.constant 0 : i32
    %c0_i32_1 = arith.constant 0 : i32
    return %arg0, %c0_i32, %c0_i32_0 : i32, i32, i32
  }
}

</mosaic_0001>

<llo_original>
// kernel: tpu_custom_call.1
$region0: #{tpu_custom_call.1}
  #allocation0 [shape = 'u32[]', space=smem, size = 0x4, offset = 0x4, fixed_abs, tag = 'smem constant byte address 0x4 - core index']
  #allocation1 [shape = 'u32[144,128]{1,0:T(1,128)}', space=vmem, size = 0x12000, scoped, tag = 'internal scratch']
  %s0 = inlined_call_operand.vmem [shape: f32[2,16,8], index: 0, kind: input, shape index: {}]
  %s1 = inlined_call_operand.vmem [shape: f32[7,8], index: 1, kind: input, shape index: {}]
  %s2 = inlined_call_operand.vmem [shape: f32[1,8], index: 2, kind: input, shape index: {}]
  %s3 = inlined_call_operand.vmem [shape: f32[1,8], index: 3, kind: input, shape index: {}]
  %s4 = inlined_call_operand.vmem [shape: f32[1,8], index: 4, kind: input, shape index: {}]
  %s5 = inlined_call_operand.vmem [shape: f32[8,32], index: 5, kind: input, shape index: {}]
  %s6 = inlined_call_operand.vmem [shape: f32[1,32], index: 6, kind: input, shape index: {}]
  %s7 = inlined_call_operand.vmem [shape: f32[1,32], index: 7, kind: input, shape index: {}]
  %s8 = inlined_call_operand.vmem [shape: f32[1,32], index: 8, kind: input, shape index: {}]
  %s9 = inlined_call_operand.vmem [shape: f32[32,8], index: 9, kind: input, shape index: {}]
  %s10 = inlined_call_operand.vmem [shape: f32[1,8], index: 10, kind: input, shape index: {}]
  %s11 = inlined_call_operand.vmem [shape: f32[2,16,8], index: 11, kind: output, shape index: {}]
  %s12 = sld [smem:[#allocation0]]
  $region54: #{tpu_custom_call.1} parent=0
    _
  %s14 = ssub.s32 1, %s12
  %s15 = scalar_select 0, %s14, %s12
  // Predicated region
  $region2: #{tpu_custom_call.1} parent=0 // pred_check
    _
  $region3: #{tpu_custom_call.1} parent=0 // pred_check_branch
    %17 = sbr.rel (0) target = $region5
  $region4: #{tpu_custom_call.1} parent=0 // pred_region
    _
  $region5: #{tpu_custom_call.1} parent=0 // pred_fallthru
    _
  // Predicated region
  $region6: #{tpu_custom_call.1} parent=0 // pred_check
    _
  $region7: #{tpu_custom_call.1} parent=0 // pred_check_branch
    %19 = sbr.rel (0) target = $region9
  $region8: #{tpu_custom_call.1} parent=0 // pred_region
    _
  $region9: #{tpu_custom_call.1} parent=0 // pred_fallthru
    _
  // Predicated region
  $region10: #{tpu_custom_call.1} parent=0 // pred_check
    _
  $region11: #{tpu_custom_call.1} parent=0 // pred_check_branch
    %21 = sbr.rel (0) target = $region13
  $region12: #{tpu_custom_call.1} parent=0 // pred_region
    _
  $region13: #{tpu_custom_call.1} parent=0 // pred_fallthru
    _
  // Predicated region
  $region14: #{tpu_custom_call.1} parent=0 // pred_check
    _
  $region15: #{tpu_custom_call.1} parent=0 // pred_check_branch
    %23 = sbr.rel (0) target = $region17
  $region16: #{tpu_custom_call.1} parent=0 // pred_region
    _
  $region17: #{tpu_custom_call.1} parent=0 // pred_fallthru
    _
  // Predicated region
  $region18: #{tpu_custom_call.1} parent=0 // pred_check
    _
  $region19: #{tpu_custom_call.1} parent=0 // pred_check_branch
    %25 = sbr.rel (0) target = $region21
  $region20: #{tpu_custom_call.1} parent=0 // pred_region
    _
  $region21: #{tpu_custom_call.1} parent=0 // pred_fallthru
    _
  // Predicated region
  $region22: #{tpu_custom_call.1} parent=0 // pred_check
    _
  $region23: #{tpu_custom_call.1} parent=0 // pred_check_branch
    %27 = sbr.rel (0) target = $region25
  $region24: #{tpu_custom_call.1} parent=0 // pred_region
    _
  $region25: #{tpu_custom_call.1} parent=0 // pred_fallthru
    _
  // Predicated region
  $region26: #{tpu_custom_call.1} parent=0 // pred_check
    _
  $region27: #{tpu_custom_call.1} parent=0 // pred_check_branch
    %29 = sbr.rel (0) target = $region29
  $region28: #{tpu_custom_call.1} parent=0 // pred_region
    _
  $region29: #{tpu_custom_call.1} parent=0 // pred_fallthru
    _
  // Predicated region
  $region30: #{tpu_custom_call.1} parent=0 // pred_check
    _
  $region31: #{tpu_custom_call.1} parent=0 // pred_check_branch
    %31 = sbr.rel (0) target = $region33
  $region32: #{tpu_custom_call.1} parent=0 // pred_region
    _
  $region33: #{tpu_custom_call.1} parent=0 // pred_fallthru
    _
  // Predicated region
  $region34: #{tpu_custom_call.1} parent=0 // pred_check
    _
  $region35: #{tpu_custom_call.1} parent=0 // pred_check_branch
    %33 = sbr.rel (0) target = $region37
  $region36: #{tpu_custom_call.1} parent=0 // pred_region
    _
  $region37: #{tpu_custom_call.1} parent=0 // pred_fallthru
    _
  // Predicated region
  $region38: #{tpu_custom_call.1} parent=0 // pred_check
    _
  $region39: #{tpu_custom_call.1} parent=0 // pred_check_branch
    %35 = sbr.rel (0) target = $region41
  $region40: #{tpu_custom_call.1} parent=0 // pred_region
    _
  $region41: #{tpu_custom_call.1} parent=0 // pred_fallthru
    _
  // Predicated region
  $region42: #{tpu_custom_call.1} parent=0 // pred_check
    _
  $region43: #{tpu_custom_call.1} parent=0 // pred_check_branch
    %37 = sbr.rel (0) target = $region45
  $region44: #{tpu_custom_call.1} parent=0 // pred_region
    _
  $region45: #{tpu_custom_call.1} parent=0 // pred_fallthru
    _
  %v38 = vld [vmem:[%s0] sm:$0xff]
  %v39 = vld [vmem:[%s0 + $0x8] sm:$0xff]
  %v40 = vld [vmem:[%s0 + $0x10] sm:$0xff]
  %v41 = vld [vmem:[%s0 + $0x18] sm:$0xff]
  %v42 = vld [vmem:[%s1] sm:$0x7f]
  %v43 = vlaneseq
  %v44 = vshrl.u32 %v43, 7
  %v45 = vadd.s32 %v44, 8
  %v46 = vadd.s32 %v44, 16
  %v47 = vadd.s32 %v44, 24
  %vm48 = vcmp.lt.s32.totalorder %v44, 0
  %v49 = vsub.s32 0, %v44
  %v50 = vsel %vm48, %v49, %v44
  %v51 = vshrl.u32 %v50, 4
  %v52 = vand.u32 %v50, 15
  %v53 = vsub.s32 0, %v52
  %v54 = vsel %vm48, %v53, %v52
  %vm55 = vcmp.lt.s32.totalorder %v45, 0
  %v56 = vsub.s32 0, %v45
  %v57 = vsel %vm55, %v56, %v45
  %v58 = vshrl.u32 %v57, 4
  %v59 = vand.u32 %v57, 15
  %v60 = vsub.s32 0, %v59
  %v61 = vsel %vm55, %v60, %v59
  %vm62 = vcmp.lt.s32.totalorder %v46, 0
  %v63 = vsub.s32 0, %v46
  %v64 = vsel %vm62, %v63, %v46
  %v65 = vshrl.u32 %v64, 4
  %v66 = vand.u32 %v64, 15
  %v67 = vsub.s32 0, %v66
  %v68 = vsel %vm62, %v67, %v66
  %vm69 = vcmp.lt.s32.totalorder %v47, 0
  %v70 = vsub.s32 0, %v47
  %v71 = vsel %vm69, %v70, %v47
  %v72 = vshrl.u32 %v71, 4
  %v73 = vand.u32 %v71, 15
  %v74 = vsub.s32 0, %v73
  %v75 = vsel %vm69, %v74, %v73
  %vm76 = vcmp.ne.s32.totalorder %v54, 0
  %vm77 = vcmp.ne.s32.totalorder %v61, 0
  %vm78 = vcmp.ne.s32.totalorder %v68, 0
  %vm79 = vcmp.ne.s32.totalorder %v75, 0
  %vm80 = vcmp.lt.s32.totalorder %v54, 0
  %vm81 = vcmp.lt.s32.totalorder %v61, 0
  %vm82 = vcmp.lt.s32.totalorder %v68, 0
  %vm83 = vcmp.lt.s32.totalorder %v75, 0
  %vm84 = vmand %vm80, %vm76
  %vm85 = vmand %vm81, %vm77
  %vm86 = vmand %vm82, %vm78
  %vm87 = vmand %vm83, %vm79
  %v88 = vadd.s32 %v54, 16
  %v89 = vadd.s32 %v61, 16
  %v90 = vadd.s32 %v68, 16
  %v91 = vadd.s32 %v75, 16
  %v92 = vsel %vm84, %v88, %v54
  %v93 = vsel %vm85, %v89, %v61
  %v94 = vsel %vm86, %v90, %v68
  %v95 = vsel %vm87, %v91, %v75
  %v96 = vlaneseq
  %v97 = vshrl.u32 %v96, 7
  %v98 = vsub.s32 3, %v97
  %v99 = vrot.slane %v42, %v98
  %v100 = vmul.f32 %v38, %v99
  %v101 = vmul.f32 %v39, %v99
  %v102 = vmul.f32 %v40, %v99
  %v103 = vmul.f32 %v41, %v99
  %v104 = vrot.slane %v38, 5
  %v105 = vrot.slane %v39, 5
  %v106 = vrot.slane %v40, 5
  %v107 = vrot.slane %v41, 5
  %vm108 = vcmp.lt.s32.totalorder %v44, 3
  %v109 = vsel %vm108, %v106, %v107
  %v110 = vsel %vm108, %v105, %v106
  %v111 = vsel %vm108, %v104, %v105
  %v112 = vsel %vm108, %v107, %v104
  %v113 = vadd.s32 %v92, 4294967293
  %v114 = vadd.s32 %v93, 4294967293
  %v115 = vadd.s32 %v94, 4294967293
  %v116 = vadd.s32 %v95, 4294967293
  %vm117 = vcmp.ge.s32.totalorder %v113, 0
  %vm118 = vcmp.ge.s32.totalorder %v114, 0
  %vm119 = vcmp.ge.s32.totalorder %v115, 0
  %vm120 = vcmp.ge.s32.totalorder %v116, 0
  %vm121 = vcmp.lt.s32.totalorder %v113, 16
  %vm122 = vcmp.lt.s32.totalorder %v114, 16
  %vm123 = vcmp.lt.s32.totalorder %v115, 16
  %vm124 = vcmp.lt.s32.totalorder %v116, 16
  %vm125 = vmand %vm117, %vm121
  %vm126 = vmand %vm118, %vm122
  %vm127 = vmand %vm119, %vm123
  %vm128 = vmand %vm120, %vm124
  %v129 = vsel %vm125, 1, 0
  %v130 = vsel %vm126, 1, 0
  %v131 = vsel %vm127, 1, 0
  %v132 = vsel %vm128, 1, 0
  %vm133 = vcmp.eq.s32.totalorder %v129, 1
  %vm134 = vcmp.eq.s32.totalorder %v130, 1
  %vm135 = vcmp.eq.s32.totalorder %v131, 1
  %vm136 = vcmp.eq.s32.totalorder %v132, 1
  %v137 = vsel %vm133, %v112, 0.0
  %v138 = vsel %vm134, %v111, 0.0
  %v139 = vsel %vm135, %v110, 0.0
  %v140 = vsel %vm136, %v109, 0.0
  %v141 = vlaneseq
  %v142 = vshrl.u32 %v141, 7
  %v143 = vsub.s32 0, %v142
  %v144 = vrot.slane %v42, %v143
  %v145 = vmul.f32 %v137, %v144
  %v146 = vmul.f32 %v138, %v144
  %v147 = vmul.f32 %v139, %v144
  %v148 = vmul.f32 %v140, %v144
  %v149 = vadd.f32 %v100, %v145
  %v150 = vadd.f32 %v101, %v146
  %v151 = vadd.f32 %v102, %v147
  %v152 = vadd.f32 %v103, %v148
  %v153 = vrot.slane %v38, 6
  %v154 = vrot.slane %v39, 6
  %v155 = vrot.slane %v40, 6
  %v156 = vrot.slane %v41, 6
  %vm157 = vcmp.lt.s32.totalorder %v44, 2
  %v158 = vsel %vm157, %v155, %v156
  %v159 = vsel %vm157, %v154, %v155
  %v160 = vsel %vm157, %v153, %v154
  %v161 = vsel %vm157, %v156, %v153
  %v162 = vadd.s32 %v92, 4294967294
  %v163 = vadd.s32 %v93, 4294967294
  %v164 = vadd.s32 %v94, 4294967294
  %v165 = vadd.s32 %v95, 4294967294
  %vm166 = vcmp.ge.s32.totalorder %v162, 0
  %vm167 = vcmp.ge.s32.totalorder %v163, 0
  %vm168 = vcmp.ge.s32.totalorder %v164, 0
  %vm169 = vcmp.ge.s32.totalorder %v165, 0
  %vm170 = vcmp.lt.s32.totalorder %v162, 16
  %vm171 = vcmp.lt.s32.totalorder %v163, 16
  %vm172 = vcmp.lt.s32.totalorder %v164, 16
  %vm173 = vcmp.lt.s32.totalorder %v165, 16
  %vm174 = vmand %vm166, %vm170
  %vm175 = vmand %vm167, %vm171
  %vm176 = vmand %vm168, %vm172
  %vm177 = vmand %vm169, %vm173
  %v178 = vsel %vm174, 1, 0
  %v179 = vsel %vm175, 1, 0
  %v180 = vsel %vm176, 1, 0
  %v181 = vsel %vm177, 1, 0
  %vm182 = vcmp.eq.s32.totalorder %v178, 1
  %vm183 = vcmp.eq.s32.totalorder %v179, 1
  %vm184 = vcmp.eq.s32.totalorder %v180, 1
  %vm185 = vcmp.eq.s32.totalorder %v181, 1
  %v186 = vsel %vm182, %v161, 0.0
  %v187 = vsel %vm183, %v160, 0.0
  %v188 = vsel %vm184, %v159, 0.0
  %v189 = vsel %vm185, %v158, 0.0
  %v190 = vlaneseq
  %v191 = vshrl.u32 %v190, 7
  %v192 = vsub.s32 1, %v191
  %v193 = vrot.slane %v42, %v192
  %v194 = vmul.f32 %v186, %v193
  %v195 = vmul.f32 %v187, %v193
  %v196 = vmul.f32 %v188, %v193
  %v197 = vmul.f32 %v189, %v193
  %v198 = vadd.f32 %v149, %v194
  %v199 = vadd.f32 %v150, %v195
  %v200 = vadd.f32 %v151, %v196
  %v201 = vadd.f32 %v152, %v197
  %v202 = vrot.slane %v38, 7
  %v203 = vrot.slane %v39, 7
  %v204 = vrot.slane %v40, 7
  %v205 = vrot.slane %v41, 7
  %vm206 = vcmp.lt.s32.totalorder %v44, 1
  %v207 = vsel %vm206, %v204, %v205
  %v208 = vsel %vm206, %v203, %v204
  %v209 = vsel %vm206, %v202, %v203
  %v210 = vsel %vm206, %v205, %v202
  %v211 = vadd.s32 %v92, 4294967295
  %v212 = vadd.s32 %v93, 4294967295
  %v213 = vadd.s32 %v94, 4294967295
  %v214 = vadd.s32 %v95, 4294967295
  %vm215 = vcmp.ge.s32.totalorder %v211, 0
  %vm216 = vcmp.ge.s32.totalorder %v212, 0
  %vm217 = vcmp.ge.s32.totalorder %v213, 0
  %vm218 = vcmp.ge.s32.totalorder %v214, 0
  %vm219 = vcmp.lt.s32.totalorder %v211, 16
  %vm220 = vcmp.lt.s32.totalorder %v212, 16
  %vm221 = vcmp.lt.s32.totalorder %v213, 16
  %vm222 = vcmp.lt.s32.totalorder %v214, 16
  %vm223 = vmand %vm215, %vm219
  %vm224 = vmand %vm216, %vm220
  %vm225 = vmand %vm217, %vm221
  %vm226 = vmand %vm218, %vm222
  %v227 = vsel %vm223, 1, 0
  %v228 = vsel %vm224, 1, 0
  %v229 = vsel %vm225, 1, 0
  %v230 = vsel %vm226, 1, 0
  %vm231 = vcmp.eq.s32.totalorder %v227, 1
  %vm232 = vcmp.eq.s32.totalorder %v228, 1
  %vm233 = vcmp.eq.s32.totalorder %v229, 1
  %vm234 = vcmp.eq.s32.totalorder %v230, 1
  %v235 = vsel %vm231, %v210, 0.0
  %v236 = vsel %vm232, %v209, 0.0
  %v237 = vsel %vm233, %v208, 0.0
  %v238 = vsel %vm234, %v207, 0.0
  %v239 = vlaneseq
  %v240 = vshrl.u32 %v239, 7
  %v241 = vsub.s32 2, %v240
  %v242 = vrot.slane %v42, %v241
  %v243 = vmul.f32 %v235, %v242
  %v244 = vmul.f32 %v236, %v242
  %v245 = vmul.f32 %v237, %v242
  %v246 = vmul.f32 %v238, %v242
  %v247 = vadd.f32 %v198, %v243
  %v248 = vadd.f32 %v199, %v244
  %v249 = vadd.f32 %v200, %v245
  %v250 = vadd.f32 %v201, %v246
  %v251 = vrot.slane %v38, 1
  %v252 = vrot.slane %v39, 1
  %v253 = vrot.slane %v40, 1
  %v254 = vrot.slane %v41, 1
  %vm255 = vcmp.lt.s32.totalorder %v44, 7
  %v256 = vsel %vm255, %v253, %v254
  %v257 = vsel %vm255, %v252, %v253
  %v258 = vsel %vm255, %v251, %v252
  %v259 = vsel %vm255, %v254, %v251
  %v260 = vadd.s32 %v92, 1
  %v261 = vadd.s32 %v93, 1
  %v262 = vadd.s32 %v94, 1
  %v263 = vadd.s32 %v95, 1
  %vm264 = vcmp.ge.s32.totalorder %v260, 0
  %vm265 = vcmp.ge.s32.totalorder %v261, 0
  %vm266 = vcmp.ge.s32.totalorder %v262, 0
  %vm267 = vcmp.ge.s32.totalorder %v263, 0
  %vm268 = vcmp.lt.s32.totalorder %v260, 16
  %vm269 = vcmp.lt.s32.totalorder %v261, 16
  %vm270 = vcmp.lt.s32.totalorder %v262, 16
  %vm271 = vcmp.lt.s32.totalorder %v263, 16
  %vm272 = vmand %vm264, %vm268
  %vm273 = vmand %vm265, %vm269
  %vm274 = vmand %vm266, %vm270
  %vm275 = vmand %vm267, %vm271
  %v276 = vsel %vm272, 1, 0
  %v277 = vsel %vm273, 1, 0
  %v278 = vsel %vm274, 1, 0
  %v279 = vsel %vm275, 1, 0
  %vm280 = vcmp.eq.s32.totalorder %v276, 1
  %vm281 = vcmp.eq.s32.totalorder %v277, 1
  %vm282 = vcmp.eq.s32.totalorder %v278, 1
  %vm283 = vcmp.eq.s32.totalorder %v279, 1
  %v284 = vsel %vm280, %v258, 0.0
  %v285 = vsel %vm281, %v257, 0.0
  %v286 = vsel %vm282, %v256, 0.0
  %v287 = vsel %vm283, %v259, 0.0
  %v288 = vlaneseq
  %v289 = vshrl.u32 %v288, 7
  %v290 = vsub.s32 4, %v289
  %v291 = vrot.slane %v42, %v290
  %v292 = vmul.f32 %v284, %v291
  %v293 = vmul.f32 %v285, %v291
  %v294 = vmul.f32 %v286, %v291
  %v295 = vmul.f32 %v287, %v291
  %v296 = vadd.f32 %v247, %v292
  %v297 = vadd.f32 %v248, %v293
  %v298 = vadd.f32 %v249, %v294
  %v299 = vadd.f32 %v250, %v295
  %v300 = vrot.slane %v38, 2
  %v301 = vrot.slane %v39, 2
  %v302 = vrot.slane %v40, 2
  %v303 = vrot.slane %v41, 2
  %vm304 = vcmp.lt.s32.totalorder %v44, 6
  %v305 = vsel %vm304, %v302, %v303
  %v306 = vsel %vm304, %v301, %v302
  %v307 = vsel %vm304, %v300, %v301
  %v308 = vsel %vm304, %v303, %v300
  %v309 = vadd.s32 %v92, 2
  %v310 = vadd.s32 %v93, 2
  %v311 = vadd.s32 %v94, 2
  %v312 = vadd.s32 %v95, 2
  %vm313 = vcmp.ge.s32.totalorder %v309, 0
  %vm314 = vcmp.ge.s32.totalorder %v310, 0
  %vm315 = vcmp.ge.s32.totalorder %v311, 0
  %vm316 = vcmp.ge.s32.totalorder %v312, 0
  %vm317 = vcmp.lt.s32.totalorder %v309, 16
  %vm318 = vcmp.lt.s32.totalorder %v310, 16
  %vm319 = vcmp.lt.s32.totalorder %v311, 16
  %vm320 = vcmp.lt.s32.totalorder %v312, 16
  %vm321 = vmand %vm313, %vm317
  %vm322 = vmand %vm314, %vm318
  %vm323 = vmand %vm315, %vm319
  %vm324 = vmand %vm316, %vm320
  %v325 = vsel %vm321, 1, 0
  %v326 = vsel %vm322, 1, 0
  %v327 = vsel %vm323, 1, 0
  %v328 = vsel %vm324, 1, 0
  %vm329 = vcmp.eq.s32.totalorder %v325, 1
  %vm330 = vcmp.eq.s32.totalorder %v326, 1
  %vm331 = vcmp.eq.s32.totalorder %v327, 1
  %vm332 = vcmp.eq.s32.totalorder %v328, 1
  %v333 = vsel %vm329, %v307, 0.0
  %v334 = vsel %vm330, %v306, 0.0
  %v335 = vsel %vm331, %v305, 0.0
  %v336 = vsel %vm332, %v308, 0.0
  %v337 = vlaneseq
  %v338 = vshrl.u32 %v337, 7
  %v339 = vsub.s32 5, %v338
  %v340 = vrot.slane %v42, %v339
  %v341 = vmul.f32 %v333, %v340
  %v342 = vmul.f32 %v334, %v340
  %v343 = vmul.f32 %v335, %v340
  %v344 = vmul.f32 %v336, %v340
  %v345 = vadd.f32 %v296, %v341
  %v346 = vadd.f32 %v297, %v342
  %v347 = vadd.f32 %v298, %v343
  %v348 = vadd.f32 %v299, %v344
  %v349 = vrot.slane %v38, 3
  %v350 = vrot.slane %v39, 3
  %v351 = vrot.slane %v40, 3
  %v352 = vrot.slane %v41, 3
  %vm353 = vcmp.lt.s32.totalorder %v44, 5
  %v354 = vsel %vm353, %v351, %v352
  %v355 = vsel %vm353, %v350, %v351
  %v356 = vsel %vm353, %v349, %v350
  %v357 = vsel %vm353, %v352, %v349
  %v358 = vadd.s32 %v92, 3
  %v359 = vadd.s32 %v93, 3
  %v360 = vadd.s32 %v94, 3
  %v361 = vadd.s32 %v95, 3
  %vm362 = vcmp.ge.s32.totalorder %v358, 0
  %vm363 = vcmp.ge.s32.totalorder %v359, 0
  %vm364 = vcmp.ge.s32.totalorder %v360, 0
  %vm365 = vcmp.ge.s32.totalorder %v361, 0
  %vm366 = vcmp.lt.s32.totalorder %v358, 16
  %vm367 = vcmp.lt.s32.totalorder %v359, 16
  %vm368 = vcmp.lt.s32.totalorder %v360, 16
  %vm369 = vcmp.lt.s32.totalorder %v361, 16
  %vm370 = vmand %vm362, %vm366
  %vm371 = vmand %vm363, %vm367
  %vm372 = vmand %vm364, %vm368
  %vm373 = vmand %vm365, %vm369
  %v374 = vsel %vm370, 1, 0
  %v375 = vsel %vm371, 1, 0
  %v376 = vsel %vm372, 1, 0
  %v377 = vsel %vm373, 1, 0
  %vm378 = vcmp.eq.s32.totalorder %v374, 1
  %vm379 = vcmp.eq.s32.totalorder %v375, 1
  %vm380 = vcmp.eq.s32.totalorder %v376, 1
  %vm381 = vcmp.eq.s32.totalorder %v377, 1
  %v382 = vsel %vm378, %v356, 0.0
  %v383 = vsel %vm379, %v355, 0.0
  %v384 = vsel %vm380, %v354, 0.0
  %v385 = vsel %vm381, %v357, 0.0
  %v386 = vlaneseq
  %v387 = vshrl.u32 %v386, 7
  %v388 = vsub.s32 6, %v387
  %v389 = vrot.slane %v42, %v388
  %v390 = vmul.f32 %v382, %v389
  %v391 = vmul.f32 %v383, %v389
  %v392 = vmul.f32 %v384, %v389
  %v393 = vmul.f32 %v385, %v389
  %v394 = vadd.f32 %v345, %v390
  %v395 = vadd.f32 %v346, %v391
  %v396 = vadd.f32 %v347, %v392
  %v397 = vadd.f32 %v348, %v393
  %v398 = vld [vmem:[%s2] sm:$0x1]
  %v400 = vlaneseq
  %v401 = vshrl.u32 %v400, 7
  %v402 = vsub.s32 0, %v401
  %v403 = vrot.slane %v398, %v402
  %v405 = vadd.f32 %v394, %v403
  %v406 = vadd.f32 %v395, %v403
  %v407 = vadd.f32 %v396, %v403
  %v408 = vadd.f32 %v397, %v403
  %vm409 = vcmask 64512
  %v410 = vsel %vm409, %v405, 0.0
  %411 = vadd.xlane.f32.xlu0 %v410
  %v412 = vpop.xlane.xlu0 %411
  %v413 = vsel %vm409, %v406, 0.0
  %414 = vadd.xlane.f32.xlu0 %v413
  %v415 = vpop.xlane.xlu0 %414
  %v416 = vsel %vm409, %v407, 0.0
  %417 = vadd.xlane.f32.xlu0 %v416
  %v418 = vpop.xlane.xlu0 %417
  %v419 = vsel %vm409, %v408, 0.0
  %420 = vadd.xlane.f32.xlu0 %v419
  %v421 = vpop.xlane.xlu0 %420
  %v422 = vrcp.pop 8.0
  %v423 = vmul.f32 %v412, %v422
  %v424 = vmul.f32 %v415, %v422
  %v425 = vmul.f32 %v418, %v422
  %v426 = vmul.f32 %v421, %v422
  %v427 = vsub.f32 %v405, %v423
  %v428 = vsub.f32 %v406, %v424
  %v429 = vsub.f32 %v407, %v425
  %v430 = vsub.f32 %v408, %v426
  %v431 = vmul.f32 %v427, %v427
  %v432 = vmul.f32 %v428, %v428
  %v433 = vmul.f32 %v429, %v429
  %v434 = vmul.f32 %v430, %v430
  %v435 = vsel %vm409, %v431, 0.0
  %436 = vadd.xlane.f32.xlu0 %v435
  %v437 = vpop.xlane.xlu0 %436
  %v438 = vsel %vm409, %v432, 0.0
  %439 = vadd.xlane.f32.xlu0 %v438
  %v440 = vpop.xlane.xlu0 %439
  %v441 = vsel %vm409, %v433, 0.0
  %442 = vadd.xlane.f32.xlu0 %v441
  %v443 = vpop.xlane.xlu0 %442
  %v444 = vsel %vm409, %v434, 0.0
  %445 = vadd.xlane.f32.xlu0 %v444
  %v446 = vpop.xlane.xlu0 %445
  %v447 = vmul.f32 %v437, %v422
  %v448 = vmul.f32 %v440, %v422
  %v449 = vmul.f32 %v443, %v422
  %v450 = vmul.f32 %v446, %v422
  %v451 = vadd.f32 %v447, 1e-06
  %v452 = vadd.f32 %v448, 1e-06
  %v453 = vadd.f32 %v449, 1e-06
  %v454 = vadd.f32 %v450, 1e-06
  %v455 = vrsqrt.pop %v451
  %v456 = vrsqrt.pop %v452
  %v457 = vrsqrt.pop %v453
  %v458 = vrsqrt.pop %v454
  %v459 = vmul.f32 %v427, %v455
  %v460 = vmul.f32 %v428, %v456
  %v461 = vmul.f32 %v429, %v457
  %v462 = vmul.f32 %v430, %v458
  %v463 = vld [vmem:[%s3] sm:$0x1]
  %v465 = vlaneseq
  %v466 = vshrl.u32 %v465, 7
  %v467 = vsub.s32 0, %v466
  %v468 = vrot.slane %v463, %v467
  %v470 = vmul.f32 %v459, %v468
  %v471 = vmul.f32 %v460, %v468
  %v472 = vmul.f32 %v461, %v468
  %v473 = vmul.f32 %v462, %v468
  %v474 = vld [vmem:[%s4] sm:$0x1]
  %v476 = vlaneseq
  %v477 = vshrl.u32 %v476, 7
  %v478 = vsub.s32 0, %v477
  %v479 = vrot.slane %v474, %v478
  %v481 = vadd.f32 %v470, %v479
  %v482 = vadd.f32 %v471, %v479
  %v483 = vadd.f32 %v472, %v479
  %v484 = vadd.f32 %v473, %v479
  %v485 = vld [vmem:[%s5] sm:$0xff]
  %v486 = vld [vmem:[%s6] sm:$0x1]
  %v488 = vlaneseq
  %v489 = vshrl.u32 %v488, 7
  %v490 = vsub.s32 0, %v489
  %v491 = vrot.slane %v486, %v490
  %v494 = vsel %vm409, %v481, 0
  %v497 = vsel %vm409, %v482, 0
  %v500 = vsel %vm409, %v483, 0
  %v503 = vsel %vm409, %v484, 0
  %505 = vmatprep.subr.mxu0 0.0
  %506 = vmatpush1.msra.mxu0 %v485
  %507 = vmatprep.subr.mxu0 0.0
  %508 = vmatpush1.msra.mxu0 0.0
  %509 = vmatprep.subr.mxu0 0.0
  %510 = vmatpush1.msra.mxu0 0.0
  %511 = vmatprep.subr.mxu0 0.0
  %512 = vmatpush1.msra.mxu0 0.0
  %513 = vmatprep.subr.mxu0 0.0
  %514 = vmatpush1.msra.mxu0 0.0
  %515 = vmatprep.subr.mxu0 0.0
  %516 = vmatpush1.msra.mxu0 0.0
  %517 = vmatprep.subr.mxu0 0.0
  %518 = vmatpush1.msra.mxu0 0.0
  %519 = vmatprep.subr.mxu0 0.0
  %520 = vmatpush1.msra.mxu0 0.0
  %521 = vmatprep.subr.mxu0 0.0
  %522 = vmatpush1.msra.mxu0 0.0
  %523 = vmatprep.subr.mxu0 0.0
  %524 = vmatpush1.msra.mxu0 0.0
  %525 = vmatprep.subr.mxu0 0.0
  %526 = vmatpush1.msra.mxu0 0.0
  %527 = vmatprep.subr.mxu0 0.0
  %528 = vmatpush1.msra.mxu0 0.0
  %529 = vmatprep.subr.mxu0 0.0
  %530 = vmatpush1.msra.mxu0 0.0
  %531 = vmatprep.subr.mxu0 0.0
  %532 = vmatpush1.msra.mxu0 0.0
  %533 = vmatprep.subr.mxu0 0.0
  %534 = vmatpush1.msra.mxu0 0.0
  %535 = vmatprep.subr.mxu0 0.0
  %536 = vmatpush1.msra.mxu0 0.0
  %537 = vmatprep.subr.mxu0 0.0
  %538 = vmatpush1.msra.mxu0 0.0
  %539 = vmatprep.subr.mxu0 0.0
  %540 = vmatpush1.msra.mxu0 0.0
  %541 = vmatprep.subr.mxu0 0.0
  %542 = vmatpush1.msra.mxu0 0.0
  %543 = vmatprep.subr.mxu0 0.0
  %544 = vmatpush1.msra.mxu0 0.0
  %545 = vmatprep.subr.mxu0 0.0
  %546 = vmatpush1.msra.mxu0 0.0
  %547 = vmatprep.subr.mxu0 0.0
  %548 = vmatpush1.msra.mxu0 0.0
  %549 = vmatprep.subr.mxu0 0.0
  %550 = vmatpush1.msra.mxu0 0.0
  %551 = vmatprep.subr.mxu0 0.0
  %552 = vmatpush1.msra.mxu0 0.0
  %553 = vmatprep.subr.mxu0 0.0
  %554 = vmatpush1.msra.mxu0 0.0
  %555 = vmatprep.subr.mxu0 0.0
  %556 = vmatpush1.msra.mxu0 0.0
  %557 = vmatprep.subr.mxu0 0.0
  %558 = vmatpush1.msra.mxu0 0.0
  %559 = vmatprep.subr.mxu0 0.0
  %560 = vmatpush1.msra.mxu0 0.0
  %561 = vmatprep.subr.mxu0 0.0
  %562 = vmatpush1.msra.mxu0 0.0
  %563 = vmatprep.subr.mxu0 0.0
  %564 = vmatpush1.msra.mxu0 0.0
  %565 = vmatprep.subr.mxu0 0.0
  %566 = vmatpush1.msra.mxu0 0.0
  %567 = vmatprep.subr.mxu0 0.0
  %568 = vmatpush1.msra.mxu0 0.0
  %569 = vmatprep.mubr.f32.mxu0 0.0
  %570 = vmatmul.mubr.f32.gmra.mrb[0].mxu0 %v494
  %v571 = vpop.f32.mrb[0].mxu0
  %v572 = vadd.f32 %v491, %v571
  %v573 = vpop.f32.mrb[0].mxu0
  %574 = vmatprep.mubr.f32.mxu0 0.0
  %575 = vmatmul.mubr.f32.gmra.mrb[0].mxu0 %v497
  %v576 = vpop.f32.mrb[0].mxu0
  %v577 = vadd.f32 %v491, %v576
  %v578 = vpop.f32.mrb[0].mxu0
  %579 = vmatprep.mubr.f32.mxu0 0.0
  %580 = vmatmul.mubr.f32.gmra.mrb[0].mxu0 %v500
  %v581 = vpop.f32.mrb[0].mxu0
  %v582 = vadd.f32 %v491, %v581
  %v583 = vpop.f32.mrb[0].mxu0
  %584 = vmatprep.mubr.f32.mxu0 0.0
  %585 = vmatmul.mubr.f32.gmra.mrb[0].mxu0 %v503
  %v586 = vpop.f32.mrb[0].mxu0
  %v587 = vadd.f32 %v491, %v586
  %v588 = vpop.f32.mrb[0].mxu0
  %589 = vdwg.mxu0
  %v590 = vmul.f32 %v572, 0.5
  %v591 = vmul.f32 %v577, 0.5
  %v592 = vmul.f32 %v582, 0.5
  %v593 = vmul.f32 %v587, 0.5
  %v594 = vmul.f32 %v572, 0.70710677
  %v595 = vmul.f32 %v577, 0.70710677
  %v596 = vmul.f32 %v582, 0.70710677
  %v597 = vmul.f32 %v587, 0.70710677
  %v598 = verf.f32.pop %v594
  %v599 = verf.f32.pop %v595
  %v600 = verf.f32.pop %v596
  %v601 = verf.f32.pop %v597
  %v602 = vadd.f32 %v598, 1.0
  %v603 = vadd.f32 %v599, 1.0
  %v604 = vadd.f32 %v600, 1.0
  %v605 = vadd.f32 %v601, 1.0
  %v606 = vmul.f32 %v590, %v602
  %v607 = vmul.f32 %v591, %v603
  %v608 = vmul.f32 %v592, %v604
  %v609 = vmul.f32 %v593, %v605
  %v610 = vmul.f32 %v606, %v606
  %v611 = vmul.f32 %v607, %v607
  %v612 = vmul.f32 %v608, %v608
  %v613 = vmul.f32 %v609, %v609
  %vm614 = vcmask 261120
  %v615 = vsel %vm614, %v610, 0.0
  %v616 = vsel %vm614, %v611, 0.0
  %v617 = vadd.f32 %v615, %v616
  %v618 = vrot.slane %v617, 4
  %v619 = vadd.f32 %v617, %v618
  %v620 = vrot.slane %v619, 2
  %v621 = vadd.f32 %v619, %v620
  %v622 = vrot.slane %v621, 1
  %v623 = vadd.f32 %v621, %v622
  %v624 = vsel %vm614, %v612, 0.0
  %v625 = vsel %vm614, %v613, 0.0
  %v626 = vadd.f32 %v624, %v625
  %v627 = vrot.slane %v626, 4
  %v628 = vadd.f32 %v626, %v627
  %v629 = vrot.slane %v628, 2
  %v630 = vadd.f32 %v628, %v629
  %v631 = vrot.slane %v630, 1
  %v632 = vadd.f32 %v630, %v631
  %v633 = vrsqrt.pop %v623
  %v634 = vmul.f32 %v623, %v633
  %vm635 = vcmp.eq.f32.partialorder %v623, inf
  %v636 = vsel %vm635, %v623, %v634
  %vm637 = vcmp.eq.f32.partialorder %v623, 0.0
  %v638 = vand.u32 %v623, 2147483648
  %v639 = vsel %vm637, %v638, %v636
  %v640 = vrsqrt.pop %v632
  %v641 = vmul.f32 %v632, %v640
  %vm642 = vcmp.eq.f32.partialorder %v632, inf
  %v643 = vsel %vm642, %v632, %v641
  %vm644 = vcmp.eq.f32.partialorder %v632, 0.0
  %v645 = vand.u32 %v632, 2147483648
  %v646 = vsel %vm644, %v645, %v643
  %v647 = vsel %vm614, %v639, 0.0
  %648 = vadd.xlane.f32.xlu0 %v647
  %v649 = vpop.xlane.xlu0 %648
  %v650 = vsel %vm614, %v646, 0.0
  %651 = vadd.xlane.f32.xlu0 %v650
  %v652 = vpop.xlane.xlu0 %651
  %v653 = vrcp.pop 32.0
  %v654 = vmul.f32 %v649, %v653
  %v655 = vmul.f32 %v652, %v653
  %v656 = vadd.f32 %v654, 1e-06
  %v657 = vadd.f32 %v655, 1e-06
  %v658 = vrcp.pop %v656
  %v659 = vmul.f32 %v639, %v658
  %v660 = vrcp.pop %v657
  %v661 = vmul.f32 %v646, %v660
  %v662 = vld [vmem:[%s7] sm:$0x1]
  %v663 = vmul.f32 %v606, %v659
  %v664 = vmul.f32 %v607, %v659
  %v665 = vmul.f32 %v608, %v661
  %v666 = vmul.f32 %v609, %v661
  %v668 = vlaneseq
  %v669 = vshrl.u32 %v668, 7
  %v670 = vsub.s32 0, %v669
  %v671 = vrot.slane %v662, %v670
  %v673 = vmul.f32 %v671, %v663
  %v674 = vmul.f32 %v671, %v664
  %v675 = vmul.f32 %v671, %v665
  %v676 = vmul.f32 %v671, %v666
  %v677 = vld [vmem:[%s8] sm:$0x1]
  %v679 = vlaneseq
  %v680 = vshrl.u32 %v679, 7
  %v681 = vsub.s32 0, %v680
  %v682 = vrot.slane %v677, %v681
  %v684 = vadd.f32 %v673, %v682
  %v685 = vadd.f32 %v674, %v682
  %v686 = vadd.f32 %v675, %v682
  %v687 = vadd.f32 %v676, %v682
  %v688 = vadd.f32 %v684, %v606
  %v689 = vadd.f32 %v685, %v607
  %v690 = vadd.f32 %v686, %v608
  %v691 = vadd.f32 %v687, %v609
  %v692 = vld [vmem:[%s9] sm:$0xff]
  %v693 = vld [vmem:[%s9 + $0x8] sm:$0xff]
  %v694 = vld [vmem:[%s9 + $0x10] sm:$0xff]
  %v695 = vld [vmem:[%s9 + $0x18] sm:$0xff]
  %v696 = vld [vmem:[%s10] sm:$0x1]
  %v698 = vlaneseq
  %v699 = vshrl.u32 %v698, 7
  %v700 = vsub.s32 0, %v699
  %v701 = vrot.slane %v696, %v700
  %v704 = vsel %vm614, %v688, 0
  %v707 = vsel %vm614, %v689, 0
  %v710 = vsel %vm614, %v690, 0
  %v713 = vsel %vm614, %v691, 0
  %715 = vmatprep.subr.mxu0 0.0
  %716 = vmatpush1.msra.mxu0 %v692
  %717 = vmatprep.subr.mxu0 0.0
  %718 = vmatpush1.msra.mxu0 %v693
  %719 = vmatprep.subr.mxu0 0.0
  %720 = vmatpush1.msra.mxu0 %v694
  %721 = vmatprep.subr.mxu0 0.0
  %722 = vmatpush1.msra.mxu0 %v695
  %723 = vmatprep.subr.mxu0 0.0
  %724 = vmatpush1.msra.mxu0 0.0
  %725 = vmatprep.subr.mxu0 0.0
  %726 = vmatpush1.msra.mxu0 0.0
  %727 = vmatprep.subr.mxu0 0.0
  %728 = vmatpush1.msra.mxu0 0.0
  %729 = vmatprep.subr.mxu0 0.0
  %730 = vmatpush1.msra.mxu0 0.0
  %731 = vmatprep.subr.mxu0 0.0
  %732 = vmatpush1.msra.mxu0 0.0
  %733 = vmatprep.subr.mxu0 0.0
  %734 = vmatpush1.msra.mxu0 0.0
  %735 = vmatprep.subr.mxu0 0.0
  %736 = vmatpush1.msra.mxu0 0.0
  %737 = vmatprep.subr.mxu0 0.0
  %738 = vmatpush1.msra.mxu0 0.0
  %739 = vmatprep.subr.mxu0 0.0
  %740 = vmatpush1.msra.mxu0 0.0
  %741 = vmatprep.subr.mxu0 0.0
  %742 = vmatpush1.msra.mxu0 0.0
  %743 = vmatprep.subr.mxu0 0.0
  %744 = vmatpush1.msra.mxu0 0.0
  %745 = vmatprep.subr.mxu0 0.0
  %746 = vmatpush1.msra.mxu0 0.0
  %747 = vmatprep.subr.mxu0 0.0
  %748 = vmatpush1.msra.mxu0 0.0
  %749 = vmatprep.subr.mxu0 0.0
  %750 = vmatpush1.msra.mxu0 0.0
  %751 = vmatprep.subr.mxu0 0.0
  %752 = vmatpush1.msra.mxu0 0.0
  %753 = vmatprep.subr.mxu0 0.0
  %754 = vmatpush1.msra.mxu0 0.0
  %755 = vmatprep.subr.mxu0 0.0
  %756 = vmatpush1.msra.mxu0 0.0
  %757 = vmatprep.subr.mxu0 0.0
  %758 = vmatpush1.msra.mxu0 0.0
  %759 = vmatprep.subr.mxu0 0.0
  %760 = vmatpush1.msra.mxu0 0.0
  %761 = vmatprep.subr.mxu0 0.0
  %762 = vmatpush1.msra.mxu0 0.0
  %763 = vmatprep.subr.mxu0 0.0
  %764 = vmatpush1.msra.mxu0 0.0
  %765 = vmatprep.subr.mxu0 0.0
  %766 = vmatpush1.msra.mxu0 0.0
  %767 = vmatprep.subr.mxu0 0.0
  %768 = vmatpush1.msra.mxu0 0.0
  %769 = vmatprep.subr.mxu0 0.0
  %770 = vmatpush1.msra.mxu0 0.0
  %771 = vmatprep.subr.mxu0 0.0
  %772 = vmatpush1.msra.mxu0 0.0
  %773 = vmatprep.subr.mxu0 0.0
  %774 = vmatpush1.msra.mxu0 0.0
  %775 = vmatprep.subr.mxu0 0.0
  %776 = vmatpush1.msra.mxu0 0.0
  %777 = vmatprep.subr.mxu0 0.0
  %778 = vmatpush1.msra.mxu0 0.0
  %779 = vmatprep.mubr.f32.mxu0 0.0
  %780 = vmatmul.mubr.f32.gmra.mrb[0].mxu0 %v704
  %v781 = vpop.f32.mrb[0].mxu0
  %v782 = vadd.f32 %v701, %v781
  %v783 = vpop.f32.mrb[0].mxu0
  %784 = vmatprep.mubr.f32.mxu0 0.0
  %785 = vmatmul.mubr.f32.gmra.mrb[0].mxu0 %v707
  %v786 = vpop.f32.mrb[0].mxu0
  %v787 = vadd.f32 %v701, %v786
  %v788 = vpop.f32.mrb[0].mxu0
  %789 = vmatprep.mubr.f32.mxu0 0.0
  %790 = vmatmul.mubr.f32.gmra.mrb[0].mxu0 %v710
  %v791 = vpop.f32.mrb[0].mxu0
  %v792 = vadd.f32 %v701, %v791
  %v793 = vpop.f32.mrb[0].mxu0
  %794 = vmatprep.mubr.f32.mxu0 0.0
  %795 = vmatmul.mubr.f32.gmra.mrb[0].mxu0 %v713
  %v796 = vpop.f32.mrb[0].mxu0
  %v797 = vadd.f32 %v701, %v796
  %v798 = vpop.f32.mrb[0].mxu0
  %799 = vdwg.mxu0
  %v800 = vadd.f32 %v38, %v782
  %v801 = vadd.f32 %v39, %v787
  %v802 = vadd.f32 %v40, %v792
  %v803 = vadd.f32 %v41, %v797
  %804 = vst.msk [vmem:[%s11] sm:$0xff] %vm409, %v800
  %805 = vst.msk [vmem:[%s11 + $0x8] sm:$0xff] %vm409, %v801
  %806 = vst.msk [vmem:[%s11 + $0x10] sm:$0xff] %vm409, %v802
  %807 = vst.msk [vmem:[%s11 + $0x18] sm:$0xff] %vm409, %v803
  // Predicated region
  $region46: #{tpu_custom_call.1} parent=0 // pred_check
    _
  $region47: #{tpu_custom_call.1} parent=0 // pred_check_branch
    %809 = sbr.rel (0) target = $region49
  $region48: #{tpu_custom_call.1} parent=0 // pred_region
    _
  $region49: #{tpu_custom_call.1} parent=0 // pred_fallthru
    _
  // Predicated region
  $region50: #{tpu_custom_call.1} parent=0 // pred_check
    _
  $region51: #{tpu_custom_call.1} parent=0 // pred_check_branch
    %811 = sbr.rel (0) target = $region53
  $region52: #{tpu_custom_call.1} parent=0 // pred_region
    _
  $region53: #{tpu_custom_call.1} parent=0 // pred_fallthru
    _

</llo_original>
